<compile_context>
chip_gen: v6e
topology: v6e:2x2x1
jax: 0.10.0
libtpu: 0.0.40
codegen_flags: <defaults>
</compile_context>

<pallas_src>
import functools

import jax
import jax.numpy as jnp
from jax.experimental import pallas as pl
from jax.experimental.pallas import tpu as pltpu

LANES = 128          # lane width of the padded feature axis
N_LAYERS = 5
MIN_TILE = 256       # row-tile granularity for the multi-tile path


def _mlp_kernel(x_ref, w_ref, o_ref, *, in_dim):
    # x_ref: (tile_b, in_dim) f32 raw input rows (pad/cast fused here)
    # w_ref: (5, 128, 128) bf16 packed weights; rows [:fan_in] = W, row 127 = bias
    # o_ref: (tile_b, 128) lane-dense output; only [:, :out_dim] is meaningful
    h = x_ref[...].astype(jnp.bfloat16)                               # (tile_b, in_dim)

    # Layer 1: K = in_dim (slice the zero-padded weight rows away), bias via VPU add.
    w1 = w_ref[0, pl.ds(0, in_dim), :]                                # (in_dim, 128)
    b1 = w_ref[0, pl.ds(LANES - 1, 1), :].astype(jnp.float32)         # (1, 128)
    y = jnp.dot(h, w1, preferred_element_type=jnp.float32) + b1
    h = jnp.maximum(y, 0.0).astype(jnp.bfloat16)                      # (tile_b, 128)

    # Layers 2..5: activations are lane-dense 128-wide; padded lanes (>= fan_out of
    # the previous layer, incl. lane 127) are exactly 0, so dotting against the full
    # (128,128) block — which also contains the bias row — adds nothing spurious.
    for i in range(1, N_LAYERS):
        bi = w_ref[i, pl.ds(LANES - 1, 1), :].astype(jnp.float32)     # (1, 128)
        y = jnp.dot(h, w_ref[i], preferred_element_type=jnp.float32) + bi
        if i < N_LAYERS - 1:
            h = jnp.maximum(y, 0.0).astype(jnp.bfloat16)              # ReLU in f32, bf16 for MXU

    o_ref[...] = y.astype(o_ref.dtype)


def pack_params(params):
    """Pack w1..w5 / b1..b5 into one (5, 128, 128) bf16 slab (bias in row 127)."""
    blocks = []
    for i in range(1, N_LAYERS + 1):
        w = params[f"w{i}"].astype(jnp.float32)            # (fan_in, fan_out)
        b = params[f"b{i}"].reshape(-1).astype(jnp.float32)
        fan_in, fan_out = w.shape
        assert fan_in <= LANES - 1, "fan_in must leave row 127 free for the bias"
        assert fan_out <= (LANES if i == N_LAYERS else LANES - 1)
        blk = jnp.zeros((LANES, LANES), jnp.float32)
        blk = blk.at[:fan_in, :fan_out].set(w)
        blk = blk.at[LANES - 1, :fan_out].set(b)           # bias row
        blocks.append(blk)
    return jnp.stack(blocks).astype(jnp.bfloat16)


def _pick_row_tile(rows, tile_rows):
    """Row tile: <= tile_rows, 256-aligned, and >= 2 grid steps whenever rows > 256
    so v7x's two TensorCores both get work.  Tiny batches get one 16-aligned tile."""
    if rows <= MIN_TILE:
        return max(16, 16 * pl.cdiv(rows, 16))             # bf16-native (16,128) packing
    half = MIN_TILE * pl.cdiv(pl.cdiv(rows, 2), MIN_TILE)  # ~rows/2, rounded up to 256
    return max(MIN_TILE, min(tile_rows, half))


def respiration_decoder1(x, slab, out_dim, *, tile_rows=1024, out_dtype=jnp.float32):
    """x: (rows, in_dim) f32.  slab: packed (5,128,128) bf16 params.

    Pass out_dtype=jnp.bfloat16 to halve the output writeback stream (default f32
    matches the PyTorch module's output dtype)."""
    rows, in_dim = x.shape
    assert in_dim <= LANES - 1
    assert tile_rows % MIN_TILE == 0

    tile_b = _pick_row_tile(rows, tile_rows)
    grid = (pl.cdiv(rows, tile_b),)   # ragged last tile handled by Pallas block masking

    out = pl.pallas_call(
        functools.partial(_mlp_kernel, in_dim=in_dim),
        grid=grid,
        in_specs=[
            # raw input rows; last block dim == full array dim -> legal, no wrapper pad/cast
            pl.BlockSpec((tile_b, in_dim), lambda i: (i, 0)),
            # constant index_map -> weight slab DMA'd once, stays VMEM-resident
            pl.BlockSpec((N_LAYERS, LANES, LANES), lambda i: (0, 0, 0)),
        ],
        out_specs=pl.BlockSpec((tile_b, LANES), lambda i: (i, 0)),
        out_shape=jax.ShapeDtypeStruct((rows, LANES), out_dtype),
        compiler_params=pltpu.CompilerParams(
            dimension_semantics=("parallel",)),   # shards row tiles across v7x's 2 TCs
    )(x, slab)
    return out[:, :out_dim]


def init_params(key, input_dim, output_dim):
    """Deterministic synthetic init matching nn.Linear shapes (stored as (in, out))."""
    dims = [input_dim, 64, 32, 16, 16, output_dim]
    params = {}
    keys = jax.random.split(key, 2 * N_LAYERS)
    for i in range(N_LAYERS):
        fan_in, fan_out = dims[i], dims[i + 1]
        bound = 1.0 / jnp.sqrt(float(fan_in))
        params[f"w{i + 1}"] = jax.random.uniform(
            keys[2 * i], (fan_in, fan_out), jnp.float32, -bound, bound)
        params[f"b{i + 1}"] = jax.random.uniform(
            keys[2 * i + 1], (fan_out,), jnp.float32, -bound, bound)
    return params


def reference_f32(x, params):
    h = x
    for i in range(1, N_LAYERS):
        h = jnp.maximum(h @ params[f"w{i}"] + params[f"b{i}"], 0.0)
    return h @ params[f"w{N_LAYERS}"] + params[f"b{N_LAYERS}"]


def reference_bf16(x, params):
    """Emulates the kernel's numerics: bf16 dot operands, f32 accumulation/bias/ReLU."""
    h = x.astype(jnp.bfloat16)
    for i in range(1, N_LAYERS + 1):
        w = params[f"w{i}"].astype(jnp.bfloat16)
        b = params[f"b{i}"].astype(jnp.bfloat16).astype(jnp.float32)
        y = jnp.dot(h, w, preferred_element_type=jnp.float32) + b
        if i < N_LAYERS:
            h = jnp.maximum(y, 0.0).astype(jnp.bfloat16)
    return y


if __name__ == "__main__":
    key = jax.random.PRNGKey(0)
    k_x, k_x2, k_x3, k_p = jax.random.split(key, 4)

    batch, input_dim, output_dim = 8, 32, 8
    x = jax.random.normal(k_x, (batch, input_dim), jnp.float32)
    params = init_params(k_p, input_dim, output_dim)
    slab = pack_params(params)

    # Small (single 16-row tile) call.
    out = jax.block_until_ready(respiration_decoder1(x, slab, output_dim))
    assert out.shape == (batch, output_dim)
    assert jnp.allclose(out, reference_bf16(x, params), atol=2e-4, rtol=2e-4)
    assert jnp.allclose(out, reference_f32(x, params), atol=5e-2, rtol=5e-2)

    # Non-multiple batch exercising the ragged multi-tile parallel grid (tile=256, grid=(2,)).
    x2 = jax.random.normal(k_x2, (300, input_dim), jnp.float32)
    out2 = jax.block_until_ready(respiration_decoder1(x2, slab, output_dim))
    assert out2.shape == (300, output_dim)
    assert jnp.allclose(out2, reference_bf16(x2, params), atol=2e-4, rtol=2e-4)
    assert jnp.allclose(out2, reference_f32(x2, params), atol=5e-2, rtol=5e-2)

    # bf16 output path (halves the HBM writeback stream).
    out2_bf16 = jax.block_until_ready(
        respiration_decoder1(x2, slab, output_dim, out_dtype=jnp.bfloat16))
    assert out2_bf16.dtype == jnp.bfloat16
    assert jnp.allclose(out2_bf16.astype(jnp.float32), reference_bf16(x2, params),
                        atol=2e-2, rtol=2e-2)

    # Larger batch exercising the 1024-row tile / 2-step parallel grid (main perf path).
    x3 = jax.random.normal(k_x3, (2048, input_dim), jnp.float32)
    out3 = jax.block_until_ready(respiration_decoder1(x3, slab, output_dim))
    assert out3.shape == (2048, output_dim)
    assert jnp.allclose(out3, reference_bf16(x3, params), atol=2e-4, rtol=2e-4)

    print("KERNEL_OK")
</pallas_src>

<mosaic_0001>
module attributes {stable_mosaic.version = 11 : i64} {
  func.func @_mlp_kernel(%arg0: i32, %arg1: memref<16x32xf32, #tpu.memory_space<vmem>>, %arg2: memref<5x128x128xbf16, #tpu.memory_space<vmem>>, %arg3: memref<16x128xf32, #tpu.memory_space<vmem>>) attributes {dimension_semantics = [#tpu.dimension_semantics<parallel>], iteration_bounds = array<i64: 1>, scalar_prefetch = 0 : i64, scratch_operands = 0 : i64, tpu.core_type = #tpu.core_type<tc>, window_params = [{transform_indices = @transform_0, window_bounds = array<i64: 16, 32>}, {pipeline_mode = #tpu.pipeline_mode<synchronous>, transform_indices = @transform_1, window_bounds = array<i64: 5, 128, 128>}, {transform_indices = @transform_2, window_bounds = array<i64: 16, 128>}]} {
    %c0 = arith.constant 0 : index
    %c0_0 = arith.constant 0 : index
    %0 = vector.load %arg1[%c0, %c0_0] : memref<16x32xf32, #tpu.memory_space<vmem>>, vector<16x32xf32>
    %1 = arith.truncf %0 : vector<16x32xf32> to vector<16x32xbf16>
    %c0_1 = arith.constant 0 : index
    %c0_2 = arith.constant 0 : index
    %c0_3 = arith.constant 0 : index
    %2 = vector.load %arg2[%c0_1, %c0_2, %c0_3] : memref<5x128x128xbf16, #tpu.memory_space<vmem>>, vector<1x32x128xbf16>
    %3 = vector.shape_cast %2 : vector<1x32x128xbf16> to vector<32x128xbf16>
    %c0_4 = arith.constant 0 : index
    %c127 = arith.constant 127 : index
    %c0_5 = arith.constant 0 : index
    %4 = vector.load %arg2[%c0_4, %c127, %c0_5] : memref<5x128x128xbf16, #tpu.memory_space<vmem>>, vector<1x1x128xbf16>
    %5 = vector.shape_cast %4 : vector<1x1x128xbf16> to vector<1x128xbf16>
    %6 = arith.extf %5 : vector<1x128xbf16> to vector<1x128xf32>
    %cst = arith.constant dense<0.000000e+00> : vector<16x128xf32>
    %7 = tpu.matmul %1, %3, %cst {dimension_numbers = #tpu.dot_dimension_numbers<[1], [0], [0], [1], [0, 0, 1, 1], [], []>} : vector<16x32xbf16>, vector<32x128xbf16>, vector<16x128xf32> -> vector<16x128xf32>
    %8 = vector.broadcast %6 : vector<1x128xf32> to vector<16x128xf32>
    %9 = arith.addf %7, %8 : vector<16x128xf32>
    %cst_6 = arith.constant 0.000000e+00 : f32
    %10 = vector.broadcast %cst_6 : f32 to vector<16x128xf32>
    %11 = arith.maximumf %9, %10 : vector<16x128xf32>
    %12 = arith.truncf %11 : vector<16x128xf32> to vector<16x128xbf16>
    %c1 = arith.constant 1 : index
    %c127_7 = arith.constant 127 : index
    %c0_8 = arith.constant 0 : index
    %13 = vector.load %arg2[%c1, %c127_7, %c0_8] : memref<5x128x128xbf16, #tpu.memory_space<vmem>>, vector<1x1x128xbf16>
    %14 = vector.shape_cast %13 : vector<1x1x128xbf16> to vector<1x128xbf16>
    %15 = arith.extf %14 : vector<1x128xbf16> to vector<1x128xf32>
    %c1_9 = arith.constant 1 : index
    %c0_10 = arith.constant 0 : index
    %c0_11 = arith.constant 0 : index
    %16 = vector.load %arg2[%c1_9, %c0_10, %c0_11] : memref<5x128x128xbf16, #tpu.memory_space<vmem>>, vector<1x128x128xbf16>
    %17 = vector.shape_cast %16 : vector<1x128x128xbf16> to vector<128x128xbf16>
    %cst_12 = arith.constant dense<0.000000e+00> : vector<16x128xf32>
    %18 = tpu.matmul %12, %17, %cst_12 {dimension_numbers = #tpu.dot_dimension_numbers<[1], [0], [0], [1], [0, 0, 1, 1], [], []>} : vector<16x128xbf16>, vector<128x128xbf16>, vector<16x128xf32> -> vector<16x128xf32>
    %19 = vector.broadcast %15 : vector<1x128xf32> to vector<16x128xf32>
    %20 = arith.addf %18, %19 : vector<16x128xf32>
    %cst_13 = arith.constant 0.000000e+00 : f32
    %21 = vector.broadcast %cst_13 : f32 to vector<16x128xf32>
    %22 = arith.maximumf %20, %21 : vector<16x128xf32>
    %23 = arith.truncf %22 : vector<16x128xf32> to vector<16x128xbf16>
    %c2 = arith.constant 2 : index
    %c127_14 = arith.constant 127 : index
    %c0_15 = arith.constant 0 : index
    %24 = vector.load %arg2[%c2, %c127_14, %c0_15] : memref<5x128x128xbf16, #tpu.memory_space<vmem>>, vector<1x1x128xbf16>
    %25 = vector.shape_cast %24 : vector<1x1x128xbf16> to vector<1x128xbf16>
    %26 = arith.extf %25 : vector<1x128xbf16> to vector<1x128xf32>
    %c2_16 = arith.constant 2 : index
    %c0_17 = arith.constant 0 : index
    %c0_18 = arith.constant 0 : index
    %27 = vector.load %arg2[%c2_16, %c0_17, %c0_18] : memref<5x128x128xbf16, #tpu.memory_space<vmem>>, vector<1x128x128xbf16>
    %28 = vector.shape_cast %27 : vector<1x128x128xbf16> to vector<128x128xbf16>
    %cst_19 = arith.constant dense<0.000000e+00> : vector<16x128xf32>
    %29 = tpu.matmul %23, %28, %cst_19 {dimension_numbers = #tpu.dot_dimension_numbers<[1], [0], [0], [1], [0, 0, 1, 1], [], []>} : vector<16x128xbf16>, vector<128x128xbf16>, vector<16x128xf32> -> vector<16x128xf32>
    %30 = vector.broadcast %26 : vector<1x128xf32> to vector<16x128xf32>
    %31 = arith.addf %29, %30 : vector<16x128xf32>
    %cst_20 = arith.constant 0.000000e+00 : f32
    %32 = vector.broadcast %cst_20 : f32 to vector<16x128xf32>
    %33 = arith.maximumf %31, %32 : vector<16x128xf32>
    %34 = arith.truncf %33 : vector<16x128xf32> to vector<16x128xbf16>
    %c3 = arith.constant 3 : index
    %c127_21 = arith.constant 127 : index
    %c0_22 = arith.constant 0 : index
    %35 = vector.load %arg2[%c3, %c127_21, %c0_22] : memref<5x128x128xbf16, #tpu.memory_space<vmem>>, vector<1x1x128xbf16>
    %36 = vector.shape_cast %35 : vector<1x1x128xbf16> to vector<1x128xbf16>
    %37 = arith.extf %36 : vector<1x128xbf16> to vector<1x128xf32>
    %c3_23 = arith.constant 3 : index
    %c0_24 = arith.constant 0 : index
    %c0_25 = arith.constant 0 : index
    %38 = vector.load %arg2[%c3_23, %c0_24, %c0_25] : memref<5x128x128xbf16, #tpu.memory_space<vmem>>, vector<1x128x128xbf16>
    %39 = vector.shape_cast %38 : vector<1x128x128xbf16> to vector<128x128xbf16>
    %cst_26 = arith.constant dense<0.000000e+00> : vector<16x128xf32>
    %40 = tpu.matmul %34, %39, %cst_26 {dimension_numbers = #tpu.dot_dimension_numbers<[1], [0], [0], [1], [0, 0, 1, 1], [], []>} : vector<16x128xbf16>, vector<128x128xbf16>, vector<16x128xf32> -> vector<16x128xf32>
    %41 = vector.broadcast %37 : vector<1x128xf32> to vector<16x128xf32>
    %42 = arith.addf %40, %41 : vector<16x128xf32>
    %cst_27 = arith.constant 0.000000e+00 : f32
    %43 = vector.broadcast %cst_27 : f32 to vector<16x128xf32>
    %44 = arith.maximumf %42, %43 : vector<16x128xf32>
    %45 = arith.truncf %44 : vector<16x128xf32> to vector<16x128xbf16>
    %c4 = arith.constant 4 : index
    %c127_28 = arith.constant 127 : index
    %c0_29 = arith.constant 0 : index
    %46 = vector.load %arg2[%c4, %c127_28, %c0_29] : memref<5x128x128xbf16, #tpu.memory_space<vmem>>, vector<1x1x128xbf16>
    %47 = vector.shape_cast %46 : vector<1x1x128xbf16> to vector<1x128xbf16>
    %48 = arith.extf %47 : vector<1x128xbf16> to vector<1x128xf32>
    %c4_30 = arith.constant 4 : index
    %c0_31 = arith.constant 0 : index
    %c0_32 = arith.constant 0 : index
    %49 = vector.load %arg2[%c4_30, %c0_31, %c0_32] : memref<5x128x128xbf16, #tpu.memory_space<vmem>>, vector<1x128x128xbf16>
    %50 = vector.shape_cast %49 : vector<1x128x128xbf16> to vector<128x128xbf16>
    %cst_33 = arith.constant dense<0.000000e+00> : vector<16x128xf32>
    %51 = tpu.matmul %45, %50, %cst_33 {dimension_numbers = #tpu.dot_dimension_numbers<[1], [0], [0], [1], [0, 0, 1, 1], [], []>} : vector<16x128xbf16>, vector<128x128xbf16>, vector<16x128xf32> -> vector<16x128xf32>
    %52 = vector.broadcast %48 : vector<1x128xf32> to vector<16x128xf32>
    %53 = arith.addf %51, %52 : vector<16x128xf32>
    %c0_34 = arith.constant 0 : index
    %c0_35 = arith.constant 0 : index
    %54 = vector.load %arg3[%c0_34, %c0_35] : memref<16x128xf32, #tpu.memory_space<vmem>>, vector<16x128xf32>
    tpu.vector_store %arg3[%c0_34, %c0_35], %53 {strides = array<i32>} : memref<16x128xf32, #tpu.memory_space<vmem>>, vector<16x128xf32>,
    return
  }
  func.func @transform_0(%arg0: i32) -> (i32, i32) {
    %c0_i32 = arith.constant 0 : i32
    %c0_i32_0 = arith.constant 0 : i32
    return %arg0, %c0_i32 : i32, i32
  }
  func.func @transform_1(%arg0: i32) -> (i32, i32, i32) {
    %c0_i32 = arith.constant 0 : i32
    %c0_i32_0 = arith.constant 0 : i32
    %c0_i32_1 = arith.constant 0 : i32
    %c0_i32_2 = arith.constant 0 : i32
    return %c0_i32, %c0_i32_0, %c0_i32_1 : i32, i32, i32
  }
  func.func @transform_2(%arg0: i32) -> (i32, i32) {
    %c0_i32 = arith.constant 0 : i32
    %c0_i32_0 = arith.constant 0 : i32
    return %arg0, %c0_i32 : i32, i32
  }
}

</mosaic_0001>

<llo_original>
// kernel: tpu_custom_call.1
$region0: #{tpu_custom_call.1}
  #allocation0 [shape = 'u32[]', space=smem, size = 0x4, offset = 0x4, fixed_abs, tag = 'smem constant byte address 0x4 - core index']
  #allocation1 [shape = 'u32[144,128]{1,0:T(1,128)}', space=vmem, size = 0x12000, scoped, tag = 'internal scratch']
  %s0 = inlined_call_operand.hbm [shape: f32[8,32], index: 0, kind: input, shape index: {}]
  %s1 = inlined_call_operand.hbm [shape: bf16[5,128,128], index: 1, kind: input, shape index: {}]
  %s2 = inlined_call_operand.hbm [shape: f32[8,128], index: 2, kind: output, shape index: {}]
  %s3 = sld [smem:[#allocation0]]
  $region26: #{tpu_custom_call.1} parent=0
    _
  %s5 = ssub.s32 1, %s3
  %s6 = scalar_select 0, %s5, %s3
  $region1: #{tpu_custom_call.1} parent=0
    #allocation2 [shape = 'u8[8192]{0}', space=vmem, size = 0x2000, scoped, tag = 'input window, operand 0, single buffered']
    #allocation3 [shape = 's32[1]{0}', space=sflag, size = 0x4, scoped, tag = 'scoped memory for tpu_custom_call.1']
    #allocation4 [shape = 's32[1]{0}', space=sflag, size = 0x4, scoped, tag = 'scoped memory for tpu_custom_call.1']
    #allocation5 [shape = 'u8[163840]{0}', space=vmem, size = 0x28000, scoped, tag = 'input window, operand 1, single buffered']
    #allocation6 [shape = 's32[1]{0}', space=sflag, size = 0x4, scoped, tag = 'scoped memory for tpu_custom_call.1']
    #allocation7 [shape = 'u8[8192]{0}', space=vmem, size = 0x2000, scoped, tag = 'output window, operand 0, single buffered']
    %7 = vsyncpa [#allocation3], 0
    %8 = vsyncpa [#allocation6], 0
    %9 = vsyncpa [#allocation4], 0
    // Predicated region
    $region2: #{tpu_custom_call.1} parent=1 // pred_check
      _
    $region3: #{tpu_custom_call.1} parent=1 // pred_check_branch
      %11 = sbr.rel (0) target = $region5
    $region4: #{tpu_custom_call.1} parent=1 // pred_region
      %s13 = ssub.s32 256, 128
      %14 = vsyncadd [#allocation3], %s13
      %s15 = sshll.u32 [#allocation2], 4
      %s16 = int_to_ptr.vmem [resolvable:$true] %s15
      %21 = dma.hbm_to_vmem [thread:$0]  %s0, 128, %s16, [#allocation3], 128, 128, 8
    $region5: #{tpu_custom_call.1} parent=1 // pred_fallthru
      _
    // Predicated region
    $region6: #{tpu_custom_call.1} parent=1 // pred_check
      _
    $region7: #{tpu_custom_call.1} parent=1 // pred_check_branch
      %23 = sbr.rel (0) target = $region9
    $region8: #{tpu_custom_call.1} parent=1 // pred_region
      %s25 = ssub.s32 5120, 5120
      %26 = vsyncadd [#allocation6], %s25
      %s27 = sshll.u32 [#allocation5], 4
      %s28 = int_to_ptr.vmem [resolvable:$true] %s27
      %33 = dma.hbm_to_vmem [thread:$0]  %s1, 5120, %s28, [#allocation6], 64, 64, 4
    $region9: #{tpu_custom_call.1} parent=1 // pred_fallthru
      _
    // Predicated region
    $region10: #{tpu_custom_call.1} parent=1 // pred_check
      _
    $region11: #{tpu_custom_call.1} parent=1 // pred_check_branch
      %35 = sbr.rel (0) target = $region13
    $region12: #{tpu_custom_call.1} parent=1 // pred_region
      %36 = dma.done [#allocation3], 256
    $region13: #{tpu_custom_call.1} parent=1 // pred_fallthru
      _
    // Predicated region
    $region14: #{tpu_custom_call.1} parent=1 // pred_check
      _
    $region15: #{tpu_custom_call.1} parent=1 // pred_check_branch
      %38 = sbr.rel (0) target = $region17
    $region16: #{tpu_custom_call.1} parent=1 // pred_region
      %39 = dma.done [#allocation6], 5120
    $region17: #{tpu_custom_call.1} parent=1 // pred_fallthru
      _
    %v41 = vld [vmem:[#allocation2] sm:$0xff]
    %v42 = vld [vmem:[#allocation2 + $0x8] sm:$0xff]
    %v43 = vpack.c.bf16 %v42, %v41
    %v44 = vld [vmem:[#allocation5] sm:$0xf]
    %v45 = vld [vmem:[#allocation5 + $0x4] sm:$0xf]
    %v46 = vld [vmem:[#allocation5 + $0x8] sm:$0xf]
    %v47 = vld [vmem:[#allocation5 + $0xc] sm:$0xf]
    %v48 = vld [vmem:[#allocation5 + $0x3c] sm:$0x8]
    %v49 = vunpack.c.l.bf16 %v48
    %v50 = vlaneseq
    %v51 = vshrl.u32 %v50, 7
    %v52 = vsub.s32 7, %v51
    %v53 = vrot.slane %v49, %v52
    %v58 = vunpack.c.l.b16 %v44
    %v59 = vunpack.c.l.b16 %v45
    %v60 = vunpack.c.l.b16 %v46
    %v61 = vunpack.c.l.b16 %v47
    %v62 = vpack.c.b16 %v59, %v58
    %v63 = vpack.c.b16 %v61, %v60
    %vm66 = vcmask 261120
    %v68 = vsel %vm66, %v43, 0
    %70 = vmatprep.subr.bf16.mxu0 0
    %71 = vmatpush1.bf16.msra.mxu0 0
    %72 = vmatprep.subr.bf16.mxu0 0
    %73 = vmatpush1.bf16.msra.mxu0 0
    %74 = vmatprep.subr.bf16.mxu0 0
    %75 = vmatpush1.bf16.msra.mxu0 0
    %76 = vmatprep.subr.bf16.mxu0 0
    %77 = vmatpush1.bf16.msra.mxu0 0
    %78 = vmatprep.subr.bf16.mxu0 0
    %79 = vmatpush1.bf16.msra.mxu0 0
    %80 = vmatprep.subr.bf16.mxu0 0
    %81 = vmatpush1.bf16.msra.mxu0 0
    %82 = vmatprep.subr.bf16.mxu0 0
    %83 = vmatpush1.bf16.msra.mxu0 %v63
    %84 = vmatprep.subr.bf16.mxu0 0
    %85 = vmatpush1.bf16.msra.mxu0 %v62
    %86 = vmatprep.subr.bf16.mxu0 0
    %87 = vmatpush2.bf16.msra.mxu0 0
    %88 = vmatprep.subr.bf16.mxu0 0
    %89 = vmatpush2.bf16.msra.mxu0 0
    %90 = vmatprep.subr.bf16.mxu0 0
    %91 = vmatpush2.bf16.msra.mxu0 0
    %92 = vmatprep.subr.bf16.mxu0 0
    %93 = vmatpush2.bf16.msra.mxu0 0
    %94 = vmatprep.subr.bf16.mxu0 0
    %95 = vmatpush2.bf16.msra.mxu0 0
    %96 = vmatprep.subr.bf16.mxu0 0
    %97 = vmatpush2.bf16.msra.mxu0 0
    %98 = vmatprep.subr.bf16.mxu0 0
    %99 = vmatpush2.bf16.msra.mxu0 0
    %100 = vmatprep.subr.bf16.mxu0 0
    %101 = vmatpush2.bf16.msra.mxu0 0
    %102 = vmatprep.mubr.bf16.mxu0 0
    %103 = vmatmul.mubr.bf16.gmra.mxu0 %v68
    %v104 = vpop.f32.mrf.mxu0
    %v105 = vadd.f32 %v53, %v104
    %v106 = vpop.f32.mrf.mxu0
    %v107 = vpop.f32.mrf.mxu0
    %v108 = vadd.f32 %v53, %v107
    %v109 = vpop.f32.mrf.mxu0
    %110 = vdwg.mxu0
    %v111 = vmax.f32 %v105, 0.0
    %v112 = vmax.f32 %v108, 0.0
    %v113 = vpack.c.bf16 %v112, %v111
    %s114 = scalar_lea.vmem [#allocation5], 64
    %v115 = vld [vmem:[%s114 + $0x3c] sm:$0x8]
    %v116 = vunpack.c.l.bf16 %v115
    %v117 = vld [vmem:[%s114] sm:$0xf]
    %v118 = vld [vmem:[%s114 + $0x4] sm:$0xf]
    %v119 = vld [vmem:[%s114 + $0x8] sm:$0xf]
    %v120 = vld [vmem:[%s114 + $0xc] sm:$0xf]
    %v121 = vld [vmem:[%s114 + $0x10] sm:$0xf]
    %v122 = vld [vmem:[%s114 + $0x14] sm:$0xf]
    %v123 = vld [vmem:[%s114 + $0x18] sm:$0xf]
    %v124 = vld [vmem:[%s114 + $0x1c] sm:$0xf]
    %v125 = vld [vmem:[%s114 + $0x20] sm:$0xf]
    %v126 = vld [vmem:[%s114 + $0x24] sm:$0xf]
    %v127 = vld [vmem:[%s114 + $0x28] sm:$0xf]
    %v128 = vld [vmem:[%s114 + $0x2c] sm:$0xf]
    %v129 = vld [vmem:[%s114 + $0x30] sm:$0xf]
    %v130 = vld [vmem:[%s114 + $0x34] sm:$0xf]
    %v131 = vld [vmem:[%s114 + $0x38] sm:$0xf]
    %v132 = vld [vmem:[%s114 + $0x3c] sm:$0xf]
    %v133 = vlaneseq
    %v134 = vshrl.u32 %v133, 7
    %v135 = vsub.s32 7, %v134
    %v136 = vrot.slane %v116, %v135
    %v153 = vunpack.c.l.b16 %v117
    %v154 = vunpack.c.l.b16 %v118
    %v155 = vunpack.c.l.b16 %v119
    %v156 = vunpack.c.l.b16 %v120
    %v157 = vunpack.c.l.b16 %v121
    %v158 = vunpack.c.l.b16 %v122
    %v159 = vunpack.c.l.b16 %v123
    %v160 = vunpack.c.l.b16 %v124
    %v161 = vunpack.c.l.b16 %v125
    %v162 = vunpack.c.l.b16 %v126
    %v163 = vunpack.c.l.b16 %v127
    %v164 = vunpack.c.l.b16 %v128
    %v165 = vunpack.c.l.b16 %v129
    %v166 = vunpack.c.l.b16 %v130
    %v167 = vunpack.c.l.b16 %v131
    %v168 = vunpack.c.l.b16 %v132
    %v169 = vpack.c.b16 %v154, %v153
    %v170 = vpack.c.b16 %v156, %v155
    %v171 = vpack.c.b16 %v158, %v157
    %v172 = vpack.c.b16 %v160, %v159
    %v173 = vpack.c.b16 %v162, %v161
    %v174 = vpack.c.b16 %v164, %v163
    %v175 = vpack.c.b16 %v166, %v165
    %v176 = vpack.c.b16 %v168, %v167
    %185 = vmatprep.subr.bf16.mxu0 0
    %186 = vmatpush1.bf16.msra.mxu0 %v176
    %187 = vmatprep.subr.bf16.mxu0 0
    %188 = vmatpush1.bf16.msra.mxu0 %v175
    %189 = vmatprep.subr.bf16.mxu0 0
    %190 = vmatpush1.bf16.msra.mxu0 %v174
    %191 = vmatprep.subr.bf16.mxu0 0
    %192 = vmatpush1.bf16.msra.mxu0 %v173
    %193 = vmatprep.subr.bf16.mxu0 0
    %194 = vmatpush1.bf16.msra.mxu0 %v172
    %195 = vmatprep.subr.bf16.mxu0 0
    %196 = vmatpush1.bf16.msra.mxu0 %v171
    %197 = vmatprep.subr.bf16.mxu0 0
    %198 = vmatpush1.bf16.msra.mxu0 %v170
    %199 = vmatprep.subr.bf16.mxu0 0
    %200 = vmatpush1.bf16.msra.mxu0 %v169
    %201 = vmatprep.subr.bf16.mxu0 0
    %202 = vmatpush2.bf16.msra.mxu0 0
    %203 = vmatprep.subr.bf16.mxu0 0
    %204 = vmatpush2.bf16.msra.mxu0 0
    %205 = vmatprep.subr.bf16.mxu0 0
    %206 = vmatpush2.bf16.msra.mxu0 0
    %207 = vmatprep.subr.bf16.mxu0 0
    %208 = vmatpush2.bf16.msra.mxu0 0
    %209 = vmatprep.subr.bf16.mxu0 0
    %210 = vmatpush2.bf16.msra.mxu0 0
    %211 = vmatprep.subr.bf16.mxu0 0
    %212 = vmatpush2.bf16.msra.mxu0 0
    %213 = vmatprep.subr.bf16.mxu0 0
    %214 = vmatpush2.bf16.msra.mxu0 0
    %215 = vmatprep.subr.bf16.mxu0 0
    %216 = vmatpush2.bf16.msra.mxu0 0
    %217 = vmatprep.mubr.bf16.mxu0 0
    %218 = vmatmul.mubr.bf16.gmra.mxu0 %v113
    %v219 = vpop.f32.mrf.mxu0
    %v220 = vadd.f32 %v136, %v219
    %v221 = vpop.f32.mrf.mxu0
    %v222 = vpop.f32.mrf.mxu0
    %v223 = vadd.f32 %v136, %v222
    %v224 = vpop.f32.mrf.mxu0
    %225 = vdwg.mxu0
    %v226 = vmax.f32 %v220, 0.0
    %v227 = vmax.f32 %v223, 0.0
    %v228 = vpack.c.bf16 %v227, %v226
    %s229 = scalar_lea.vmem [#allocation5], 128
    %v230 = vld [vmem:[%s229 + $0x3c] sm:$0x8]
    %v231 = vunpack.c.l.bf16 %v230
    %v232 = vld [vmem:[%s229] sm:$0xf]
    %v233 = vld [vmem:[%s229 + $0x4] sm:$0xf]
    %v234 = vld [vmem:[%s229 + $0x8] sm:$0xf]
    %v235 = vld [vmem:[%s229 + $0xc] sm:$0xf]
    %v236 = vld [vmem:[%s229 + $0x10] sm:$0xf]
    %v237 = vld [vmem:[%s229 + $0x14] sm:$0xf]
    %v238 = vld [vmem:[%s229 + $0x18] sm:$0xf]
    %v239 = vld [vmem:[%s229 + $0x1c] sm:$0xf]
    %v240 = vld [vmem:[%s229 + $0x20] sm:$0xf]
    %v241 = vld [vmem:[%s229 + $0x24] sm:$0xf]
    %v242 = vld [vmem:[%s229 + $0x28] sm:$0xf]
    %v243 = vld [vmem:[%s229 + $0x2c] sm:$0xf]
    %v244 = vld [vmem:[%s229 + $0x30] sm:$0xf]
    %v245 = vld [vmem:[%s229 + $0x34] sm:$0xf]
    %v246 = vld [vmem:[%s229 + $0x38] sm:$0xf]
    %v247 = vld [vmem:[%s229 + $0x3c] sm:$0xf]
    %v248 = vlaneseq
    %v249 = vshrl.u32 %v248, 7
    %v250 = vsub.s32 7, %v249
    %v251 = vrot.slane %v231, %v250
    %v268 = vunpack.c.l.b16 %v232
    %v269 = vunpack.c.l.b16 %v233
    %v270 = vunpack.c.l.b16 %v234
    %v271 = vunpack.c.l.b16 %v235
    %v272 = vunpack.c.l.b16 %v236
    %v273 = vunpack.c.l.b16 %v237
    %v274 = vunpack.c.l.b16 %v238
    %v275 = vunpack.c.l.b16 %v239
    %v276 = vunpack.c.l.b16 %v240
    %v277 = vunpack.c.l.b16 %v241
    %v278 = vunpack.c.l.b16 %v242
    %v279 = vunpack.c.l.b16 %v243
    %v280 = vunpack.c.l.b16 %v244
    %v281 = vunpack.c.l.b16 %v245
    %v282 = vunpack.c.l.b16 %v246
    %v283 = vunpack.c.l.b16 %v247
    %v284 = vpack.c.b16 %v269, %v268
    %v285 = vpack.c.b16 %v271, %v270
    %v286 = vpack.c.b16 %v273, %v272
    %v287 = vpack.c.b16 %v275, %v274
    %v288 = vpack.c.b16 %v277, %v276
    %v289 = vpack.c.b16 %v279, %v278
    %v290 = vpack.c.b16 %v281, %v280
    %v291 = vpack.c.b16 %v283, %v282
    %300 = vmatprep.subr.bf16.mxu0 0
    %301 = vmatpush1.bf16.msra.mxu0 %v291
    %302 = vmatprep.subr.bf16.mxu0 0
    %303 = vmatpush1.bf16.msra.mxu0 %v290
    %304 = vmatprep.subr.bf16.mxu0 0
    %305 = vmatpush1.bf16.msra.mxu0 %v289
    %306 = vmatprep.subr.bf16.mxu0 0
    %307 = vmatpush1.bf16.msra.mxu0 %v288
    %308 = vmatprep.subr.bf16.mxu0 0
    %309 = vmatpush1.bf16.msra.mxu0 %v287
    %310 = vmatprep.subr.bf16.mxu0 0
    %311 = vmatpush1.bf16.msra.mxu0 %v286
    %312 = vmatprep.subr.bf16.mxu0 0
    %313 = vmatpush1.bf16.msra.mxu0 %v285
    %314 = vmatprep.subr.bf16.mxu0 0
    %315 = vmatpush1.bf16.msra.mxu0 %v284
    %316 = vmatprep.subr.bf16.mxu0 0
    %317 = vmatpush2.bf16.msra.mxu0 0
    %318 = vmatprep.subr.bf16.mxu0 0
    %319 = vmatpush2.bf16.msra.mxu0 0
    %320 = vmatprep.subr.bf16.mxu0 0
    %321 = vmatpush2.bf16.msra.mxu0 0
    %322 = vmatprep.subr.bf16.mxu0 0
    %323 = vmatpush2.bf16.msra.mxu0 0
    %324 = vmatprep.subr.bf16.mxu0 0
    %325 = vmatpush2.bf16.msra.mxu0 0
    %326 = vmatprep.subr.bf16.mxu0 0
    %327 = vmatpush2.bf16.msra.mxu0 0
    %328 = vmatprep.subr.bf16.mxu0 0
    %329 = vmatpush2.bf16.msra.mxu0 0
    %330 = vmatprep.subr.bf16.mxu0 0
    %331 = vmatpush2.bf16.msra.mxu0 0
    %332 = vmatprep.mubr.bf16.mxu0 0
    %333 = vmatmul.mubr.bf16.gmra.mxu0 %v228
    %v334 = vpop.f32.mrf.mxu0
    %v335 = vadd.f32 %v251, %v334
    %v336 = vpop.f32.mrf.mxu0
    %v337 = vpop.f32.mrf.mxu0
    %v338 = vadd.f32 %v251, %v337
    %v339 = vpop.f32.mrf.mxu0
    %340 = vdwg.mxu0
    %v341 = vmax.f32 %v335, 0.0
    %v342 = vmax.f32 %v338, 0.0
    %v343 = vpack.c.bf16 %v342, %v341
    %s344 = scalar_lea.vmem [#allocation5], 192
    %v345 = vld [vmem:[%s344 + $0x3c] sm:$0x8]
    %v346 = vunpack.c.l.bf16 %v345
    %v347 = vld [vmem:[%s344] sm:$0xf]
    %v348 = vld [vmem:[%s344 + $0x4] sm:$0xf]
    %v349 = vld [vmem:[%s344 + $0x8] sm:$0xf]
    %v350 = vld [vmem:[%s344 + $0xc] sm:$0xf]
    %v351 = vld [vmem:[%s344 + $0x10] sm:$0xf]
    %v352 = vld [vmem:[%s344 + $0x14] sm:$0xf]
    %v353 = vld [vmem:[%s344 + $0x18] sm:$0xf]
    %v354 = vld [vmem:[%s344 + $0x1c] sm:$0xf]
    %v355 = vld [vmem:[%s344 + $0x20] sm:$0xf]
    %v356 = vld [vmem:[%s344 + $0x24] sm:$0xf]
    %v357 = vld [vmem:[%s344 + $0x28] sm:$0xf]
    %v358 = vld [vmem:[%s344 + $0x2c] sm:$0xf]
    %v359 = vld [vmem:[%s344 + $0x30] sm:$0xf]
    %v360 = vld [vmem:[%s344 + $0x34] sm:$0xf]
    %v361 = vld [vmem:[%s344 + $0x38] sm:$0xf]
    %v362 = vld [vmem:[%s344 + $0x3c] sm:$0xf]
    %v363 = vlaneseq
    %v364 = vshrl.u32 %v363, 7
    %v365 = vsub.s32 7, %v364
    %v366 = vrot.slane %v346, %v365
    %v383 = vunpack.c.l.b16 %v347
    %v384 = vunpack.c.l.b16 %v348
    %v385 = vunpack.c.l.b16 %v349
    %v386 = vunpack.c.l.b16 %v350
    %v387 = vunpack.c.l.b16 %v351
    %v388 = vunpack.c.l.b16 %v352
    %v389 = vunpack.c.l.b16 %v353
    %v390 = vunpack.c.l.b16 %v354
    %v391 = vunpack.c.l.b16 %v355
    %v392 = vunpack.c.l.b16 %v356
    %v393 = vunpack.c.l.b16 %v357
    %v394 = vunpack.c.l.b16 %v358
    %v395 = vunpack.c.l.b16 %v359
    %v396 = vunpack.c.l.b16 %v360
    %v397 = vunpack.c.l.b16 %v361
    %v398 = vunpack.c.l.b16 %v362
    %v399 = vpack.c.b16 %v384, %v383
    %v400 = vpack.c.b16 %v386, %v385
    %v401 = vpack.c.b16 %v388, %v387
    %v402 = vpack.c.b16 %v390, %v389
    %v403 = vpack.c.b16 %v392, %v391
    %v404 = vpack.c.b16 %v394, %v393
    %v405 = vpack.c.b16 %v396, %v395
    %v406 = vpack.c.b16 %v398, %v397
    %415 = vmatprep.subr.bf16.mxu0 0
    %416 = vmatpush1.bf16.msra.mxu0 %v406
    %417 = vmatprep.subr.bf16.mxu0 0
    %418 = vmatpush1.bf16.msra.mxu0 %v405
    %419 = vmatprep.subr.bf16.mxu0 0
    %420 = vmatpush1.bf16.msra.mxu0 %v404
    %421 = vmatprep.subr.bf16.mxu0 0
    %422 = vmatpush1.bf16.msra.mxu0 %v403
    %423 = vmatprep.subr.bf16.mxu0 0
    %424 = vmatpush1.bf16.msra.mxu0 %v402
    %425 = vmatprep.subr.bf16.mxu0 0
    %426 = vmatpush1.bf16.msra.mxu0 %v401
    %427 = vmatprep.subr.bf16.mxu0 0
    %428 = vmatpush1.bf16.msra.mxu0 %v400
    %429 = vmatprep.subr.bf16.mxu0 0
    %430 = vmatpush1.bf16.msra.mxu0 %v399
    %431 = vmatprep.subr.bf16.mxu0 0
    %432 = vmatpush2.bf16.msra.mxu0 0
    %433 = vmatprep.subr.bf16.mxu0 0
    %434 = vmatpush2.bf16.msra.mxu0 0
    %435 = vmatprep.subr.bf16.mxu0 0
    %436 = vmatpush2.bf16.msra.mxu0 0
    %437 = vmatprep.subr.bf16.mxu0 0
    %438 = vmatpush2.bf16.msra.mxu0 0
    %439 = vmatprep.subr.bf16.mxu0 0
    %440 = vmatpush2.bf16.msra.mxu0 0
    %441 = vmatprep.subr.bf16.mxu0 0
    %442 = vmatpush2.bf16.msra.mxu0 0
    %443 = vmatprep.subr.bf16.mxu0 0
    %444 = vmatpush2.bf16.msra.mxu0 0
    %445 = vmatprep.subr.bf16.mxu0 0
    %446 = vmatpush2.bf16.msra.mxu0 0
    %447 = vmatprep.mubr.bf16.mxu0 0
    %448 = vmatmul.mubr.bf16.gmra.mxu0 %v343
    %v449 = vpop.f32.mrf.mxu0
    %v450 = vadd.f32 %v366, %v449
    %v451 = vpop.f32.mrf.mxu0
    %v452 = vpop.f32.mrf.mxu0
    %v453 = vadd.f32 %v366, %v452
    %v454 = vpop.f32.mrf.mxu0
    %455 = vdwg.mxu0
    %v456 = vmax.f32 %v450, 0.0
    %v457 = vmax.f32 %v453, 0.0
    %v458 = vpack.c.bf16 %v457, %v456
    %s459 = scalar_lea.vmem [#allocation5], 256
    %v460 = vld [vmem:[%s459 + $0x3c] sm:$0x8]
    %v461 = vunpack.c.l.bf16 %v460
    %v462 = vld [vmem:[%s459] sm:$0xf]
    %v463 = vld [vmem:[%s459 + $0x4] sm:$0xf]
    %v464 = vld [vmem:[%s459 + $0x8] sm:$0xf]
    %v465 = vld [vmem:[%s459 + $0xc] sm:$0xf]
    %v466 = vld [vmem:[%s459 + $0x10] sm:$0xf]
    %v467 = vld [vmem:[%s459 + $0x14] sm:$0xf]
    %v468 = vld [vmem:[%s459 + $0x18] sm:$0xf]
    %v469 = vld [vmem:[%s459 + $0x1c] sm:$0xf]
    %v470 = vld [vmem:[%s459 + $0x20] sm:$0xf]
    %v471 = vld [vmem:[%s459 + $0x24] sm:$0xf]
    %v472 = vld [vmem:[%s459 + $0x28] sm:$0xf]
    %v473 = vld [vmem:[%s459 + $0x2c] sm:$0xf]
    %v474 = vld [vmem:[%s459 + $0x30] sm:$0xf]
    %v475 = vld [vmem:[%s459 + $0x34] sm:$0xf]
    %v476 = vld [vmem:[%s459 + $0x38] sm:$0xf]
    %v477 = vld [vmem:[%s459 + $0x3c] sm:$0xf]
    %v478 = vlaneseq
    %v479 = vshrl.u32 %v478, 7
    %v480 = vsub.s32 7, %v479
    %v481 = vrot.slane %v461, %v480
    %v498 = vunpack.c.l.b16 %v462
    %v499 = vunpack.c.l.b16 %v463
    %v500 = vunpack.c.l.b16 %v464
    %v501 = vunpack.c.l.b16 %v465
    %v502 = vunpack.c.l.b16 %v466
    %v503 = vunpack.c.l.b16 %v467
    %v504 = vunpack.c.l.b16 %v468
    %v505 = vunpack.c.l.b16 %v469
    %v506 = vunpack.c.l.b16 %v470
    %v507 = vunpack.c.l.b16 %v471
    %v508 = vunpack.c.l.b16 %v472
    %v509 = vunpack.c.l.b16 %v473
    %v510 = vunpack.c.l.b16 %v474
    %v511 = vunpack.c.l.b16 %v475
    %v512 = vunpack.c.l.b16 %v476
    %v513 = vunpack.c.l.b16 %v477
    %v514 = vpack.c.b16 %v499, %v498
    %v515 = vpack.c.b16 %v501, %v500
    %v516 = vpack.c.b16 %v503, %v502
    %v517 = vpack.c.b16 %v505, %v504
    %v518 = vpack.c.b16 %v507, %v506
    %v519 = vpack.c.b16 %v509, %v508
    %v520 = vpack.c.b16 %v511, %v510
    %v521 = vpack.c.b16 %v513, %v512
    %530 = vmatprep.subr.bf16.mxu0 0
    %531 = vmatpush1.bf16.msra.mxu0 %v521
    %532 = vmatprep.subr.bf16.mxu0 0
    %533 = vmatpush1.bf16.msra.mxu0 %v520
    %534 = vmatprep.subr.bf16.mxu0 0
    %535 = vmatpush1.bf16.msra.mxu0 %v519
    %536 = vmatprep.subr.bf16.mxu0 0
    %537 = vmatpush1.bf16.msra.mxu0 %v518
    %538 = vmatprep.subr.bf16.mxu0 0
    %539 = vmatpush1.bf16.msra.mxu0 %v517
    %540 = vmatprep.subr.bf16.mxu0 0
    %541 = vmatpush1.bf16.msra.mxu0 %v516
    %542 = vmatprep.subr.bf16.mxu0 0
    %543 = vmatpush1.bf16.msra.mxu0 %v515
    %544 = vmatprep.subr.bf16.mxu0 0
    %545 = vmatpush1.bf16.msra.mxu0 %v514
    %546 = vmatprep.subr.bf16.mxu0 0
    %547 = vmatpush2.bf16.msra.mxu0 0
    %548 = vmatprep.subr.bf16.mxu0 0
    %549 = vmatpush2.bf16.msra.mxu0 0
    %550 = vmatprep.subr.bf16.mxu0 0
    %551 = vmatpush2.bf16.msra.mxu0 0
    %552 = vmatprep.subr.bf16.mxu0 0
    %553 = vmatpush2.bf16.msra.mxu0 0
    %554 = vmatprep.subr.bf16.mxu0 0
    %555 = vmatpush2.bf16.msra.mxu0 0
    %556 = vmatprep.subr.bf16.mxu0 0
    %557 = vmatpush2.bf16.msra.mxu0 0
    %558 = vmatprep.subr.bf16.mxu0 0
    %559 = vmatpush2.bf16.msra.mxu0 0
    %560 = vmatprep.subr.bf16.mxu0 0
    %561 = vmatpush2.bf16.msra.mxu0 0
    %562 = vmatprep.mubr.bf16.mxu0 0
    %563 = vmatmul.mubr.bf16.gmra.mxu0 %v458
    %v564 = vpop.f32.mrf.mxu0
    %v565 = vadd.f32 %v481, %v564
    %v566 = vpop.f32.mrf.mxu0
    %v567 = vpop.f32.mrf.mxu0
    %v568 = vadd.f32 %v481, %v567
    %v569 = vpop.f32.mrf.mxu0
    %570 = vdwg.mxu0
    %571 = vst [vmem:[#allocation7] sm:$0xff] %v565
    %572 = vst [vmem:[#allocation7 + $0x8] sm:$0xff] %v568
    // Predicated region
    $region18: #{tpu_custom_call.1} parent=1 // pred_check
      _
    $region19: #{tpu_custom_call.1} parent=1 // pred_check_branch
      %574 = sbr.rel (0) target = $region21
    $region20: #{tpu_custom_call.1} parent=1 // pred_region
      %s576 = ssub.s32 256, 128
      %577 = vsyncadd [#allocation4], %s576
      %s578 = sshll.u32 [#allocation7], 4
      %s579 = int_to_ptr.vmem [resolvable:$true] %s578
      %584 = dma.vmem_to_hbm [thread:$0]  %s579, 128, %s2, [#allocation4], 128, 128, 8
    $region21: #{tpu_custom_call.1} parent=1 // pred_fallthru
      _
    // Predicated region
    $region22: #{tpu_custom_call.1} parent=1 // pred_check
      _
    $region23: #{tpu_custom_call.1} parent=1 // pred_check_branch
      %586 = sbr.rel (0) target = $region25
    $region24: #{tpu_custom_call.1} parent=1 // pred_region
      %587 = dma.done [#allocation4], 256
    $region25: #{tpu_custom_call.1} parent=1 // pred_fallthru
      _
    %588 = vsyncpa [#allocation3], 1
    %589 = vsyncpa [#allocation6], 1
    %590 = vsyncpa [#allocation4], 1

</llo_original>
